<compile_context>
chip_gen: v7x
topology: tpu7x:2x2x1
jax: 0.10.0
libtpu: 0.0.40
codegen_flags: <defaults>
</compile_context>

<pallas_src>
import jax
import jax.numpy as jnp
from jax.experimental import pallas as pl
from jax.experimental.pallas import tpu as pltpu


def _round_up(x, m):
    return (x + m - 1) // m * m


def _silu(v):
    # v * sigmoid(v); approx reciprocal lowers to the EUP slot (no VALU divide).
    return v * pl.reciprocal(1.0 + jnp.exp(-v), approx=True)


def _embedding_kernel(re_ref, xij_ref, w_re_ref, b_re_ref,
                      w_xij_ref, w_h_ref, b_ref, o_ref):
    # Fused branch linears:
    #   h = SiLU([rbf | ea] @ blockdiag(W_rbf^T, W_e^T) + [b_rbf | b_e])
    h = _silu(
        jnp.dot(re_ref[...], w_re_ref[...], preferred_element_type=jnp.float32)
        + b_re_ref[...]
    )                                                            # [TE, 2H] f32

    # Final linear over the virtual concat [x_i | x_j | rbf_h | ea_h]:
    # two K=2H matmuls; weights stream directly from their Refs.
    acc = jnp.dot(xij_ref[...], w_xij_ref[...],
                  preferred_element_type=jnp.float32)
    acc = acc + jnp.dot(h.astype(w_h_ref.dtype), w_h_ref[...],
                        preferred_element_type=jnp.float32)
    acc = acc + b_ref[...]
    o_ref[...] = _silu(acc).astype(o_ref.dtype)


def prepare_params(params, *, compute_dtype=jnp.bfloat16):
    """One-time weight preparation.  Call when parameters are loaded, NOT per
    forward: transposes, fuses rbf/edge branches into one block-diagonal weight,
    zero-pads the output dim to a lane multiple, casts to the MXU dtype."""
    f32 = jnp.float32
    H, R = params["w_rbf"].shape          # torch Linear convention: [out, in]
    De = params["w_e"].shape[1]
    K_re = R + De
    H_out = _round_up(H, 128)             # lane-dense output stores

    # block-diagonal branch weight: [rbf|ea] @ w_re == [rbf@W_rbf^T | ea@W_e^T]
    w_re = jnp.zeros((K_re, 2 * H), f32)
    w_re = w_re.at[:R, :H].set(params["w_rbf"].T.astype(f32))
    w_re = w_re.at[R:, H:].set(params["w_e"].T.astype(f32))
    b_re = jnp.concatenate([params["b_rbf"], params["b_e"]]).astype(f32)[None, :]

    w_t = params["w"].T.astype(f32)                              # [4H, H]
    w_xij = jnp.zeros((2 * H, H_out), f32).at[:, :H].set(w_t[: 2 * H])
    w_h = jnp.zeros((2 * H, H_out), f32).at[:, :H].set(w_t[2 * H:])
    b = jnp.zeros((1, H_out), f32).at[:, :H].set(params["b"].astype(f32)[None, :])

    return {
        "w_re": w_re.astype(compute_dtype),     # [K_re, 2H]
        "b_re": b_re,                           # [1, 2H]    f32 (post-acc add)
        "w_xij": w_xij.astype(compute_dtype),   # [2H, H_out]
        "w_h": w_h.astype(compute_dtype),       # [2H, H_out]
        "b": b,                                 # [1, H_out] f32
        "H": H, "R": R, "De": De, "K_re": K_re, "H_out": H_out,
        "compute_dtype": compute_dtype,
    }


def hydra_embedding_block(x, rbf, i, j, edge_attr, prepped, *,
                          tile_e=1024, vmem_limit_bytes=48 * 1024 * 1024):
    """x: [N, H]; rbf: [E, R]; i, j: [E] int32; edge_attr: [E, De] -> [E, H].

    `prepped` comes from prepare_params().  Output dtype follows x.dtype
    (compute is f32-accumulated regardless of the operand dtype)."""
    E, R = rbf.shape
    N, H = x.shape
    De = edge_attr.shape[-1]
    assert prepped["H"] == H and prepped["R"] == R and prepped["De"] == De
    H_out, K_re = prepped["H_out"], prepped["K_re"]
    cdt = prepped["compute_dtype"]

    # ---------------- glue (XLA): gather + concat in compute dtype ----------
    # Casting x BEFORE the gather halves the [E, 2H] HBM round trip when bf16.
    x_c = x.astype(cdt)
    xij = jnp.concatenate([x_c[i], x_c[j]], axis=-1)             # [E, 2H]
    re = jnp.concatenate([rbf.astype(cdt), edge_attr.astype(cdt)], axis=-1)

    # ---------------- edge tiling (ragged last block masked by Pallas) ------
    tile_e = _round_up(max(8, min(tile_e, _round_up(E, 8))), 8)
    grid = (pl.cdiv(E, tile_e),)

    edge_map = lambda e: (e, 0)
    full_map = lambda e: (0, 0)

    itemsize = jnp.dtype(cdt).itemsize
    cost = pl.CostEstimate(
        flops=2 * E * (K_re * 2 * H + 2 * (2 * H) * H_out),
        transcendentals=E * (2 * H + H_out),
        bytes_accessed=(E * (K_re + 2 * H) * itemsize
                        + E * H_out * jnp.dtype(x.dtype).itemsize
                        + (K_re * 2 * H + 2 * (2 * H) * H_out) * itemsize
                        + (2 * H + H_out) * 4),
    )

    out = pl.pallas_call(
        _embedding_kernel,
        out_shape=jax.ShapeDtypeStruct((E, H_out), x.dtype),
        grid_spec=pltpu.PrefetchScalarGridSpec(
            num_scalar_prefetch=0,
            grid=grid,
            in_specs=[
                pl.BlockSpec((tile_e, K_re), edge_map),    # [rbf | edge_attr]
                pl.BlockSpec((tile_e, 2 * H), edge_map),   # [x_i | x_j]
                pl.BlockSpec((K_re, 2 * H), full_map),     # block-diag branch W
                pl.BlockSpec((1, 2 * H), full_map),        # branch bias (f32)
                pl.BlockSpec((2 * H, H_out), full_map),    # final W (xi|xj half)
                pl.BlockSpec((2 * H, H_out), full_map),    # final W (rbf|ea half)
                pl.BlockSpec((1, H_out), full_map),        # final bias (f32)
            ],
            out_specs=pl.BlockSpec((tile_e, H_out), edge_map),
        ),
        compiler_params=pltpu.CompilerParams(
            # single edge axis; "parallel" lets megacore (v7x 2-TC) shard it
            dimension_semantics=("parallel",),
            vmem_limit_bytes=vmem_limit_bytes,   # fits v7x 64 MiB/TC budget
        ),
        cost_estimate=cost,
    )(re, xij, prepped["w_re"], prepped["b_re"],
      prepped["w_xij"], prepped["w_h"], prepped["b"])

    # No row slice needed (out_shape rows == E).  Column slice is a no-op when
    # H is already a multiple of 128 (H_out == H).
    return out if H_out == H else out[:, :H]


def _reference(x, rbf, i, j, edge_attr, params):
    silu = lambda v: v * jax.nn.sigmoid(v)
    rbf_h = silu(rbf @ params["w_rbf"].T + params["b_rbf"])
    ea_h = silu(edge_attr @ params["w_e"].T + params["b_e"])
    out = jnp.concatenate([x[i], x[j], rbf_h, ea_h], axis=-1)
    return silu(out @ params["w"].T + params["b"])


if __name__ == "__main__":
    # Small shapes consistent with the module's forward.
    N, E, H, R, De = 16, 64, 32, 8, 8

    key = jax.random.PRNGKey(0)
    keys = jax.random.split(key, 8)

    x = jax.random.normal(keys[0], (N, H), dtype=jnp.float32)
    rbf = jax.random.normal(keys[1], (E, R), dtype=jnp.float32)
    i = jax.random.randint(keys[2], (E,), 0, N, dtype=jnp.int32)
    j = jax.random.randint(keys[3], (E,), 0, N, dtype=jnp.int32)
    edge_attr = jax.random.normal(keys[4], (E, De), dtype=jnp.float32)

    # torch Linear convention: W [out, in], b [out].
    def lin_init(k, out_f, in_f):
        kw, kb = jax.random.split(k)
        s = 1.0 / jnp.sqrt(in_f)
        w_ = jax.random.uniform(kw, (out_f, in_f), jnp.float32, -s, s)
        b_ = jax.random.uniform(kb, (out_f,), jnp.float32, -s, s)
        return w_, b_

    w_rbf, b_rbf = lin_init(keys[5], H, R)
    w_e, b_e = lin_init(keys[6], H, De)
    w, b = lin_init(keys[7], H, 4 * H)
    params = {"w_rbf": w_rbf, "b_rbf": b_rbf,
              "w_e": w_e, "b_e": b_e,
              "w": w, "b": b}
    ref = _reference(x, rbf, i, j, edge_attr, params)

    # f32 operand path (tolerance accounts for approx-EUP reciprocal in SiLU).
    prepped_f32 = prepare_params(params, compute_dtype=jnp.float32)
    out = jax.block_until_ready(
        hydra_embedding_block(x, rbf, i, j, edge_attr, prepped_f32))
    assert out.shape == (E, H) and out.dtype == x.dtype
    assert jnp.allclose(out, ref, atol=5e-3, rtol=5e-3)

    # Default bf16 MXU path + ragged edge count (exercises the masked last
    # block / multi-step grid).  Loose tolerance: bf16 operands, f32 accumulate.
    prepped_bf16 = prepare_params(params)          # compute_dtype=bf16 default
    E2 = 200
    rbf2 = jax.random.normal(keys[1], (E2, R), dtype=jnp.float32)
    i2 = jax.random.randint(keys[2], (E2,), 0, N, dtype=jnp.int32)
    j2 = jax.random.randint(keys[3], (E2,), 0, N, dtype=jnp.int32)
    ea2 = jax.random.normal(keys[4], (E2, De), dtype=jnp.float32)
    ref2 = _reference(x, rbf2, i2, j2, ea2, params)
    out2 = jax.block_until_ready(
        hydra_embedding_block(x, rbf2, i2, j2, ea2, prepped_bf16, tile_e=128))
    assert out2.shape == (E2, H)
    assert jnp.allclose(out2, ref2, atol=5e-2, rtol=5e-2)

    print("KERNEL_OK")
</pallas_src>

<mosaic_0001>
module attributes {stable_mosaic.version = 11 : i64} {
  func.func @_embedding_kernel(%arg0: i32, %arg1: memref<64x16xf32, #tpu.memory_space<vmem>>, %arg2: memref<64x64xf32, #tpu.memory_space<vmem>>, %arg3: memref<16x64xf32, #tpu.memory_space<vmem>>, %arg4: memref<1x64xf32, #tpu.memory_space<vmem>>, %arg5: memref<64x128xf32, #tpu.memory_space<vmem>>, %arg6: memref<64x128xf32, #tpu.memory_space<vmem>>, %arg7: memref<1x128xf32, #tpu.memory_space<vmem>>, %arg8: memref<64x128xf32, #tpu.memory_space<vmem>>) attributes {dimension_semantics = [#tpu.dimension_semantics<parallel>], iteration_bounds = array<i64: 1>, scalar_prefetch = 0 : i64, scratch_operands = 0 : i64, tpu.core_type = #tpu.core_type<tc>, window_params = [{transform_indices = @transform_0, window_bounds = array<i64: 64, 16>}, {transform_indices = @transform_1, window_bounds = array<i64: 64, 64>}, {pipeline_mode = #tpu.pipeline_mode<synchronous>, transform_indices = @transform_2, window_bounds = array<i64: 16, 64>}, {pipeline_mode = #tpu.pipeline_mode<synchronous>, transform_indices = @transform_3, window_bounds = array<i64: 1, 64>}, {pipeline_mode = #tpu.pipeline_mode<synchronous>, transform_indices = @transform_4, window_bounds = array<i64: 64, 128>}, {pipeline_mode = #tpu.pipeline_mode<synchronous>, transform_indices = @transform_5, window_bounds = array<i64: 64, 128>}, {pipeline_mode = #tpu.pipeline_mode<synchronous>, transform_indices = @transform_6, window_bounds = array<i64: 1, 128>}, {transform_indices = @transform_7, window_bounds = array<i64: 64, 128>}]} {
    %c0 = arith.constant 0 : index
    %c0_0 = arith.constant 0 : index
    %0 = vector.load %arg1[%c0, %c0_0] : memref<64x16xf32, #tpu.memory_space<vmem>>, vector<64x16xf32>
    %c0_1 = arith.constant 0 : index
    %c0_2 = arith.constant 0 : index
    %1 = vector.load %arg3[%c0_1, %c0_2] : memref<16x64xf32, #tpu.memory_space<vmem>>, vector<16x64xf32>
    %cst = arith.constant dense<0.000000e+00> : vector<64x64xf32>
    %2 = tpu.matmul %0, %1, %cst {dimension_numbers = #tpu.dot_dimension_numbers<[1], [0], [0], [1], [0, 0, 1, 1], [], []>} : vector<64x16xf32>, vector<16x64xf32>, vector<64x64xf32> -> vector<64x64xf32>
    %c0_3 = arith.constant 0 : index
    %c0_4 = arith.constant 0 : index
    %3 = vector.load %arg4[%c0_3, %c0_4] : memref<1x64xf32, #tpu.memory_space<vmem>>, vector<1x64xf32>
    %4 = vector.broadcast %3 : vector<1x64xf32> to vector<64x64xf32>
    %5 = arith.addf %2, %4 : vector<64x64xf32>
    %cst_5 = arith.constant 0.000000e+00 : f32
    %6 = vector.broadcast %cst_5 : f32 to vector<64x64xf32>
    %7 = arith.subf %6, %5 : vector<64x64xf32>
    %8 = math.exp %7 : vector<64x64xf32>
    %cst_6 = arith.constant 1.000000e+00 : f32
    %9 = vector.broadcast %cst_6 : f32 to vector<64x64xf32>
    %10 = arith.addf %9, %8 : vector<64x64xf32>
    %11 = tpu.reciprocal %10 {approx = true} : vector<64x64xf32> -> vector<64x64xf32>
    %12 = arith.mulf %5, %11 : vector<64x64xf32>
    %c0_7 = arith.constant 0 : index
    %c0_8 = arith.constant 0 : index
    %13 = vector.load %arg2[%c0_7, %c0_8] : memref<64x64xf32, #tpu.memory_space<vmem>>, vector<64x64xf32>
    %c0_9 = arith.constant 0 : index
    %c0_10 = arith.constant 0 : index
    %14 = vector.load %arg5[%c0_9, %c0_10] : memref<64x128xf32, #tpu.memory_space<vmem>>, vector<64x128xf32>
    %cst_11 = arith.constant dense<0.000000e+00> : vector<64x128xf32>
    %15 = tpu.matmul %13, %14, %cst_11 {dimension_numbers = #tpu.dot_dimension_numbers<[1], [0], [0], [1], [0, 0, 1, 1], [], []>} : vector<64x64xf32>, vector<64x128xf32>, vector<64x128xf32> -> vector<64x128xf32>
    %c0_12 = arith.constant 0 : index
    %c0_13 = arith.constant 0 : index
    %16 = vector.load %arg6[%c0_12, %c0_13] : memref<64x128xf32, #tpu.memory_space<vmem>>, vector<64x128xf32>
    %cst_14 = arith.constant dense<0.000000e+00> : vector<64x128xf32>
    %17 = tpu.matmul %12, %16, %cst_14 {dimension_numbers = #tpu.dot_dimension_numbers<[1], [0], [0], [1], [0, 0, 1, 1], [], []>} : vector<64x64xf32>, vector<64x128xf32>, vector<64x128xf32> -> vector<64x128xf32>
    %18 = arith.addf %15, %17 : vector<64x128xf32>
    %c0_15 = arith.constant 0 : index
    %c0_16 = arith.constant 0 : index
    %19 = vector.load %arg7[%c0_15, %c0_16] : memref<1x128xf32, #tpu.memory_space<vmem>>, vector<1x128xf32>
    %20 = vector.broadcast %19 : vector<1x128xf32> to vector<64x128xf32>
    %21 = arith.addf %18, %20 : vector<64x128xf32>
    %cst_17 = arith.constant 0.000000e+00 : f32
    %22 = vector.broadcast %cst_17 : f32 to vector<64x128xf32>
    %23 = arith.subf %22, %21 : vector<64x128xf32>
    %24 = math.exp %23 : vector<64x128xf32>
    %cst_18 = arith.constant 1.000000e+00 : f32
    %25 = vector.broadcast %cst_18 : f32 to vector<64x128xf32>
    %26 = arith.addf %25, %24 : vector<64x128xf32>
    %27 = tpu.reciprocal %26 {approx = true} : vector<64x128xf32> -> vector<64x128xf32>
    %28 = arith.mulf %21, %27 : vector<64x128xf32>
    %c0_19 = arith.constant 0 : index
    %c0_20 = arith.constant 0 : index
    %29 = vector.load %arg8[%c0_19, %c0_20] : memref<64x128xf32, #tpu.memory_space<vmem>>, vector<64x128xf32>
    tpu.vector_store %arg8[%c0_19, %c0_20], %28 {strides = array<i32>} : memref<64x128xf32, #tpu.memory_space<vmem>>, vector<64x128xf32>,
    return
  }
  func.func @transform_0(%arg0: i32) -> (i32, i32) {
    %c0_i32 = arith.constant 0 : i32
    %c0_i32_0 = arith.constant 0 : i32
    return %arg0, %c0_i32 : i32, i32
  }
  func.func @transform_1(%arg0: i32) -> (i32, i32) {
    %c0_i32 = arith.constant 0 : i32
    %c0_i32_0 = arith.constant 0 : i32
    return %arg0, %c0_i32 : i32, i32
  }
  func.func @transform_2(%arg0: i32) -> (i32, i32) {
    %c0_i32 = arith.constant 0 : i32
    %c0_i32_0 = arith.constant 0 : i32
    %c0_i32_1 = arith.constant 0 : i32
    return %c0_i32, %c0_i32_0 : i32, i32
  }
  func.func @transform_3(%arg0: i32) -> (i32, i32) {
    %c0_i32 = arith.constant 0 : i32
    %c0_i32_0 = arith.constant 0 : i32
    %c0_i32_1 = arith.constant 0 : i32
    return %c0_i32, %c0_i32_0 : i32, i32
  }
  func.func @transform_4(%arg0: i32) -> (i32, i32) {
    %c0_i32 = arith.constant 0 : i32
    %c0_i32_0 = arith.constant 0 : i32
    %c0_i32_1 = arith.constant 0 : i32
    return %c0_i32, %c0_i32_0 : i32, i32
  }
  func.func @transform_5(%arg0: i32) -> (i32, i32) {
    %c0_i32 = arith.constant 0 : i32
    %c0_i32_0 = arith.constant 0 : i32
    %c0_i32_1 = arith.constant 0 : i32
    return %c0_i32, %c0_i32_0 : i32, i32
  }
  func.func @transform_6(%arg0: i32) -> (i32, i32) {
    %c0_i32 = arith.constant 0 : i32
    %c0_i32_0 = arith.constant 0 : i32
    %c0_i32_1 = arith.constant 0 : i32
    return %c0_i32, %c0_i32_0 : i32, i32
  }
  func.func @transform_7(%arg0: i32) -> (i32, i32) {
    %c0_i32 = arith.constant 0 : i32
    %c0_i32_0 = arith.constant 0 : i32
    return %arg0, %c0_i32 : i32, i32
  }
}

</mosaic_0001>

<llo_original>
// kernel: tpu_custom_call.1
$region0: #{tpu_custom_call.1}
  #allocation0 [shape = 'u32[]', space=smem, size = 0x4, offset = 0x4, fixed_abs, tag = 'smem constant byte address 0x4 - core index']
  #allocation1 [shape = 'u32[144,128]{1,0:T(1,128)}', space=vmem, size = 0x12000, scoped, tag = 'internal scratch']
  %s0 = inlined_call_operand.vmem [shape: f32[64,16], index: 0, kind: input, shape index: {}]
  %s1 = inlined_call_operand.vmem [shape: f32[64,64], index: 1, kind: input, shape index: {}]
  %s2 = inlined_call_operand.vmem [shape: f32[16,64], index: 2, kind: input, shape index: {}]
  %s3 = inlined_call_operand.vmem [shape: f32[1,64], index: 3, kind: input, shape index: {}]
  %s4 = inlined_call_operand.hbm [shape: f32[64,128], index: 4, kind: input, shape index: {}]
  %s5 = inlined_call_operand.hbm [shape: f32[64,128], index: 5, kind: input, shape index: {}]
  %s6 = inlined_call_operand.vmem [shape: f32[1,128], index: 6, kind: input, shape index: {}]
  %s7 = inlined_call_operand.hbm [shape: f32[64,128], index: 7, kind: output, shape index: {}]
  %s8 = sld [smem:[#allocation0]]
  $region46: #{tpu_custom_call.1} parent=0
    _
  %s10 = ssub.s32 1, %s8
  %s11 = scalar_select 0, %s10, %s8
  $region1: #{tpu_custom_call.1} parent=0
    #allocation2 [shape = 'u8[32768]{0}', space=vmem, size = 0x8000, scoped, tag = 'input window, operand 4, single buffered']
    #allocation3 [shape = 's32[1]{0}', space=sflag, size = 0x4, scoped, tag = 'scoped memory for tpu_custom_call.1']
    #allocation4 [shape = 's32[1]{0}', space=sflag, size = 0x4, scoped, tag = 'scoped memory for tpu_custom_call.1']
    #allocation5 [shape = 'u8[32768]{0}', space=vmem, size = 0x8000, scoped, tag = 'input window, operand 5, single buffered']
    #allocation6 [shape = 's32[1]{0}', space=sflag, size = 0x4, scoped, tag = 'scoped memory for tpu_custom_call.1']
    #allocation7 [shape = 'u8[32768]{0}', space=vmem, size = 0x8000, scoped, tag = 'output window, operand 0, single buffered']
    %12 = vsyncpa [#allocation3], 0
    %13 = vsyncpa [#allocation6], 0
    %14 = vsyncpa [#allocation4], 0
    // Predicated region
    $region2: #{tpu_custom_call.1} parent=1 // pred_check
      _
    $region3: #{tpu_custom_call.1} parent=1 // pred_check_branch
      %16 = sbr.rel (0) target = $region5
    $region4: #{tpu_custom_call.1} parent=1 // pred_region
      _
    $region5: #{tpu_custom_call.1} parent=1 // pred_fallthru
      _
    // Predicated region
    $region6: #{tpu_custom_call.1} parent=1 // pred_check
      _
    $region7: #{tpu_custom_call.1} parent=1 // pred_check_branch
      %18 = sbr.rel (0) target = $region9
    $region8: #{tpu_custom_call.1} parent=1 // pred_region
      _
    $region9: #{tpu_custom_call.1} parent=1 // pred_fallthru
      _
    // Predicated region
    $region10: #{tpu_custom_call.1} parent=1 // pred_check
      _
    $region11: #{tpu_custom_call.1} parent=1 // pred_check_branch
      %20 = sbr.rel (0) target = $region13
    $region12: #{tpu_custom_call.1} parent=1 // pred_region
      _
    $region13: #{tpu_custom_call.1} parent=1 // pred_fallthru
      _
    // Predicated region
    $region14: #{tpu_custom_call.1} parent=1 // pred_check
      _
    $region15: #{tpu_custom_call.1} parent=1 // pred_check_branch
      %22 = sbr.rel (0) target = $region17
    $region16: #{tpu_custom_call.1} parent=1 // pred_region
      _
    $region17: #{tpu_custom_call.1} parent=1 // pred_fallthru
      _
    // Predicated region
    $region18: #{tpu_custom_call.1} parent=1 // pred_check
      _
    $region19: #{tpu_custom_call.1} parent=1 // pred_check_branch
      %24 = sbr.rel (0) target = $region21
    $region20: #{tpu_custom_call.1} parent=1 // pred_region
      %s26 = ssub.s32 1024, 1024
      %27 = vsyncadd [#allocation3], %s26
      %s28 = sshll.u32 [#allocation2], 4
      %s29 = int_to_ptr.vmem [resolvable:$true] %s28
      %34 = dma.hbm_to_vmem [thread:$0]  %s4, 1024, %s29, [#allocation3], 128, 128, 8
    $region21: #{tpu_custom_call.1} parent=1 // pred_fallthru
      _
    // Predicated region
    $region22: #{tpu_custom_call.1} parent=1 // pred_check
      _
    $region23: #{tpu_custom_call.1} parent=1 // pred_check_branch
      %36 = sbr.rel (0) target = $region25
    $region24: #{tpu_custom_call.1} parent=1 // pred_region
      %s38 = ssub.s32 1024, 1024
      %39 = vsyncadd [#allocation6], %s38
      %s40 = sshll.u32 [#allocation5], 4
      %s41 = int_to_ptr.vmem [resolvable:$true] %s40
      %46 = dma.hbm_to_vmem [thread:$0]  %s5, 1024, %s41, [#allocation6], 128, 128, 8
    $region25: #{tpu_custom_call.1} parent=1 // pred_fallthru
      _
    // Predicated region
    $region26: #{tpu_custom_call.1} parent=1 // pred_check
      _
    $region27: #{tpu_custom_call.1} parent=1 // pred_check_branch
      %48 = sbr.rel (0) target = $region29
    $region28: #{tpu_custom_call.1} parent=1 // pred_region
      _
    $region29: #{tpu_custom_call.1} parent=1 // pred_fallthru
      _
    // Predicated region
    $region30: #{tpu_custom_call.1} parent=1 // pred_check
      _
    $region31: #{tpu_custom_call.1} parent=1 // pred_check_branch
      %50 = sbr.rel (0) target = $region33
    $region32: #{tpu_custom_call.1} parent=1 // pred_region
      %51 = dma.done [#allocation3], 1024
    $region33: #{tpu_custom_call.1} parent=1 // pred_fallthru
      _
    // Predicated region
    $region34: #{tpu_custom_call.1} parent=1 // pred_check
      _
    $region35: #{tpu_custom_call.1} parent=1 // pred_check_branch
      %53 = sbr.rel (0) target = $region37
    $region36: #{tpu_custom_call.1} parent=1 // pred_region
      %54 = dma.done [#allocation6], 1024
    $region37: #{tpu_custom_call.1} parent=1 // pred_fallthru
      _
    %v55 = vld [vmem:[%s0] sm:$0xff]
    %v56 = vld [vmem:[%s0 + $0x8] sm:$0xff]
    %v57 = vld [vmem:[%s0 + $0x10] sm:$0xff]
    %v58 = vld [vmem:[%s0 + $0x18] sm:$0xff]
    %v59 = vld [vmem:[%s0 + $0x20] sm:$0xff]
    %v60 = vld [vmem:[%s0 + $0x28] sm:$0xff]
    %v61 = vld [vmem:[%s0 + $0x30] sm:$0xff]
    %v62 = vld [vmem:[%s0 + $0x38] sm:$0xff]
    %v63 = vld [vmem:[%s2] sm:$0xff]
    %v64 = vld [vmem:[%s2 + $0x8] sm:$0xff]
    %v65 = vld [vmem:[%s3] sm:$0x1]
    %v67 = vlaneseq
    %v68 = vshrl.u32 %v67, 7
    %v69 = vsub.s32 0, %v68
    %v70 = vrot.slane %v65, %v69
    %vm72 = vcmask 130048
    %v74 = vsel %vm72, %v55, 0
    %v77 = vsel %vm72, %v56, 0
    %v80 = vsel %vm72, %v57, 0
    %v83 = vsel %vm72, %v58, 0
    %v86 = vsel %vm72, %v59, 0
    %v89 = vsel %vm72, %v60, 0
    %v92 = vsel %vm72, %v61, 0
    %v95 = vsel %vm72, %v62, 0
    %97 = vmatprep.subr.mxu0 0.0
    %98 = vmatpush1.msra.mxu0 %v63
    %99 = vmatprep.subr.mxu0 0.0
    %100 = vmatpush1.msra.mxu0 %v64
    %101 = vmatprep.subr.mxu0 0.0
    %102 = vmatpush1.msra.mxu0 0.0
    %103 = vmatprep.subr.mxu0 0.0
    %104 = vmatpush1.msra.mxu0 0.0
    %105 = vmatprep.subr.mxu0 0.0
    %106 = vmatpush1.msra.mxu0 0.0
    %107 = vmatprep.subr.mxu0 0.0
    %108 = vmatpush1.msra.mxu0 0.0
    %109 = vmatprep.subr.mxu0 0.0
    %110 = vmatpush1.msra.mxu0 0.0
    %111 = vmatprep.subr.mxu0 0.0
    %112 = vmatpush1.msra.mxu0 0.0
    %113 = vmatprep.subr.mxu0 0.0
    %114 = vmatpush1.msra.mxu0 0.0
    %115 = vmatprep.subr.mxu0 0.0
    %116 = vmatpush1.msra.mxu0 0.0
    %117 = vmatprep.subr.mxu0 0.0
    %118 = vmatpush1.msra.mxu0 0.0
    %119 = vmatprep.subr.mxu0 0.0
    %120 = vmatpush1.msra.mxu0 0.0
    %121 = vmatprep.subr.mxu0 0.0
    %122 = vmatpush1.msra.mxu0 0.0
    %123 = vmatprep.subr.mxu0 0.0
    %124 = vmatpush1.msra.mxu0 0.0
    %125 = vmatprep.subr.mxu0 0.0
    %126 = vmatpush1.msra.mxu0 0.0
    %127 = vmatprep.subr.mxu0 0.0
    %128 = vmatpush1.msra.mxu0 0.0
    %129 = vmatprep.subr.mxu0 0.0
    %130 = vmatpush1.msra.mxu0 0.0
    %131 = vmatprep.subr.mxu0 0.0
    %132 = vmatpush1.msra.mxu0 0.0
    %133 = vmatprep.subr.mxu0 0.0
    %134 = vmatpush1.msra.mxu0 0.0
    %135 = vmatprep.subr.mxu0 0.0
    %136 = vmatpush1.msra.mxu0 0.0
    %137 = vmatprep.subr.mxu0 0.0
    %138 = vmatpush1.msra.mxu0 0.0
    %139 = vmatprep.subr.mxu0 0.0
    %140 = vmatpush1.msra.mxu0 0.0
    %141 = vmatprep.subr.mxu0 0.0
    %142 = vmatpush1.msra.mxu0 0.0
    %143 = vmatprep.subr.mxu0 0.0
    %144 = vmatpush1.msra.mxu0 0.0
    %145 = vmatprep.subr.mxu0 0.0
    %146 = vmatpush1.msra.mxu0 0.0
    %147 = vmatprep.subr.mxu0 0.0
    %148 = vmatpush1.msra.mxu0 0.0
    %149 = vmatprep.subr.mxu0 0.0
    %150 = vmatpush1.msra.mxu0 0.0
    %151 = vmatprep.subr.mxu0 0.0
    %152 = vmatpush1.msra.mxu0 0.0
    %153 = vmatprep.subr.mxu0 0.0
    %154 = vmatpush1.msra.mxu0 0.0
    %155 = vmatprep.subr.mxu0 0.0
    %156 = vmatpush1.msra.mxu0 0.0
    %157 = vmatprep.subr.mxu0 0.0
    %158 = vmatpush1.msra.mxu0 0.0
    %159 = vmatprep.subr.mxu0 0.0
    %160 = vmatpush1.msra.mxu0 0.0
    %161 = vmatprep.mubr.f32.mxu0 0.0
    %162 = vmatmul.mubr.f32.gmra.mrb[0].mxu0 %v74
    %v163 = vpop.f32.mrb[0].mxu0
    %v164 = vadd.f32 %v70, %v163
    %v165 = vpop.f32.mrb[0].mxu0
    %166 = vmatprep.mubr.f32.mxu0 0.0
    %167 = vmatmul.mubr.f32.gmra.mrb[0].mxu0 %v77
    %v168 = vpop.f32.mrb[0].mxu0
    %v169 = vadd.f32 %v70, %v168
    %v170 = vpop.f32.mrb[0].mxu0
    %171 = vmatprep.mubr.f32.mxu0 0.0
    %172 = vmatmul.mubr.f32.gmra.mrb[0].mxu0 %v80
    %v173 = vpop.f32.mrb[0].mxu0
    %v174 = vadd.f32 %v70, %v173
    %v175 = vpop.f32.mrb[0].mxu0
    %176 = vmatprep.mubr.f32.mxu0 0.0
    %177 = vmatmul.mubr.f32.gmra.mrb[0].mxu0 %v83
    %v178 = vpop.f32.mrb[0].mxu0
    %v179 = vadd.f32 %v70, %v178
    %v180 = vpop.f32.mrb[0].mxu0
    %181 = vmatprep.mubr.f32.mxu0 0.0
    %182 = vmatmul.mubr.f32.gmra.mrb[0].mxu0 %v86
    %v183 = vpop.f32.mrb[0].mxu0
    %v184 = vadd.f32 %v70, %v183
    %v185 = vpop.f32.mrb[0].mxu0
    %186 = vmatprep.mubr.f32.mxu0 0.0
    %187 = vmatmul.mubr.f32.gmra.mrb[0].mxu0 %v89
    %v188 = vpop.f32.mrb[0].mxu0
    %v189 = vadd.f32 %v70, %v188
    %v190 = vpop.f32.mrb[0].mxu0
    %191 = vmatprep.mubr.f32.mxu0 0.0
    %192 = vmatmul.mubr.f32.gmra.mrb[0].mxu0 %v92
    %v193 = vpop.f32.mrb[0].mxu0
    %v194 = vadd.f32 %v70, %v193
    %v195 = vpop.f32.mrb[0].mxu0
    %196 = vmatprep.mubr.f32.mxu0 0.0
    %197 = vmatmul.mubr.f32.gmra.mrb[0].mxu0 %v95
    %v198 = vpop.f32.mrb[0].mxu0
    %v199 = vadd.f32 %v70, %v198
    %v200 = vpop.f32.mrb[0].mxu0
    %201 = vdwg.mxu0
    %v202 = vsub.f32 0.0, %v164
    %v203 = vsub.f32 0.0, %v169
    %v204 = vsub.f32 0.0, %v174
    %v205 = vsub.f32 0.0, %v179
    %v206 = vsub.f32 0.0, %v184
    %v207 = vsub.f32 0.0, %v189
    %v208 = vsub.f32 0.0, %v194
    %v209 = vsub.f32 0.0, %v199
    %v210 = vmul.f32 %v202, 1.442695
    %v211 = vpow.pop %v210
    %v212 = vmul.f32 %v203, 1.442695
    %v213 = vpow.pop %v212
    %v214 = vmul.f32 %v204, 1.442695
    %v215 = vpow.pop %v214
    %v216 = vmul.f32 %v205, 1.442695
    %v217 = vpow.pop %v216
    %v218 = vmul.f32 %v206, 1.442695
    %v219 = vpow.pop %v218
    %v220 = vmul.f32 %v207, 1.442695
    %v221 = vpow.pop %v220
    %v222 = vmul.f32 %v208, 1.442695
    %v223 = vpow.pop %v222
    %v224 = vmul.f32 %v209, 1.442695
    %v225 = vpow.pop %v224
    %v226 = vadd.f32 %v211, 1.0
    %v227 = vadd.f32 %v213, 1.0
    %v228 = vadd.f32 %v215, 1.0
    %v229 = vadd.f32 %v217, 1.0
    %v230 = vadd.f32 %v219, 1.0
    %v231 = vadd.f32 %v221, 1.0
    %v232 = vadd.f32 %v223, 1.0
    %v233 = vadd.f32 %v225, 1.0
    %v234 = vrcp.pop %v226
    %v235 = vrcp.pop %v227
    %v236 = vrcp.pop %v228
    %v237 = vrcp.pop %v229
    %v238 = vrcp.pop %v230
    %v239 = vrcp.pop %v231
    %v240 = vrcp.pop %v232
    %v241 = vrcp.pop %v233
    %v242 = vmul.f32 %v164, %v234
    %v243 = vmul.f32 %v169, %v235
    %v244 = vmul.f32 %v174, %v236
    %v245 = vmul.f32 %v179, %v237
    %v246 = vmul.f32 %v184, %v238
    %v247 = vmul.f32 %v189, %v239
    %v248 = vmul.f32 %v194, %v240
    %v249 = vmul.f32 %v199, %v241
    %v250 = vld [vmem:[%s1] sm:$0xff]
    %v251 = vld [vmem:[%s1 + $0x8] sm:$0xff]
    %v252 = vld [vmem:[%s1 + $0x10] sm:$0xff]
    %v253 = vld [vmem:[%s1 + $0x18] sm:$0xff]
    %v254 = vld [vmem:[%s1 + $0x20] sm:$0xff]
    %v255 = vld [vmem:[%s1 + $0x28] sm:$0xff]
    %v256 = vld [vmem:[%s1 + $0x30] sm:$0xff]
    %v257 = vld [vmem:[%s1 + $0x38] sm:$0xff]
    %v258 = vld [vmem:[#allocation2] sm:$0xff]
    %v259 = vld [vmem:[#allocation2 + $0x8] sm:$0xff]
    %v260 = vld [vmem:[#allocation2 + $0x10] sm:$0xff]
    %v261 = vld [vmem:[#allocation2 + $0x18] sm:$0xff]
    %v262 = vld [vmem:[#allocation2 + $0x20] sm:$0xff]
    %v263 = vld [vmem:[#allocation2 + $0x28] sm:$0xff]
    %v264 = vld [vmem:[#allocation2 + $0x30] sm:$0xff]
    %v265 = vld [vmem:[#allocation2 + $0x38] sm:$0xff]
    %v266 = vld [vmem:[#allocation5] sm:$0xff]
    %v267 = vld [vmem:[#allocation5 + $0x8] sm:$0xff]
    %v268 = vld [vmem:[#allocation5 + $0x10] sm:$0xff]
    %v269 = vld [vmem:[#allocation5 + $0x18] sm:$0xff]
    %v270 = vld [vmem:[#allocation5 + $0x20] sm:$0xff]
    %v271 = vld [vmem:[#allocation5 + $0x28] sm:$0xff]
    %v272 = vld [vmem:[#allocation5 + $0x30] sm:$0xff]
    %v273 = vld [vmem:[#allocation5 + $0x38] sm:$0xff]
    %vm274 = vcmask 523264
    %v276 = vsel %vm274, %v242, 0
    %v279 = vsel %vm274, %v243, 0
    %v282 = vsel %vm274, %v244, 0
    %v285 = vsel %vm274, %v245, 0
    %v288 = vsel %vm274, %v246, 0
    %v291 = vsel %vm274, %v247, 0
    %v294 = vsel %vm274, %v248, 0
    %v297 = vsel %vm274, %v249, 0
    %299 = vmatprep.subr.mxu0 0.0
    %300 = vmatpush1.msra.mxu0 %v266
    %301 = vmatprep.subr.mxu0 0.0
    %302 = vmatpush1.msra.mxu0 %v267
    %303 = vmatprep.subr.mxu0 0.0
    %304 = vmatpush1.msra.mxu0 %v268
    %305 = vmatprep.subr.mxu0 0.0
    %306 = vmatpush1.msra.mxu0 %v269
    %307 = vmatprep.subr.mxu0 0.0
    %308 = vmatpush1.msra.mxu0 %v270
    %309 = vmatprep.subr.mxu0 0.0
    %310 = vmatpush1.msra.mxu0 %v271
    %311 = vmatprep.subr.mxu0 0.0
    %312 = vmatpush1.msra.mxu0 %v272
    %313 = vmatprep.subr.mxu0 0.0
    %314 = vmatpush1.msra.mxu0 %v273
    %315 = vmatprep.subr.mxu0 0.0
    %316 = vmatpush1.msra.mxu0 0.0
    %317 = vmatprep.subr.mxu0 0.0
    %318 = vmatpush1.msra.mxu0 0.0
    %319 = vmatprep.subr.mxu0 0.0
    %320 = vmatpush1.msra.mxu0 0.0
    %321 = vmatprep.subr.mxu0 0.0
    %322 = vmatpush1.msra.mxu0 0.0
    %323 = vmatprep.subr.mxu0 0.0
    %324 = vmatpush1.msra.mxu0 0.0
    %325 = vmatprep.subr.mxu0 0.0
    %326 = vmatpush1.msra.mxu0 0.0
    %327 = vmatprep.subr.mxu0 0.0
    %328 = vmatpush1.msra.mxu0 0.0
    %329 = vmatprep.subr.mxu0 0.0
    %330 = vmatpush1.msra.mxu0 0.0
    %331 = vmatprep.subr.mxu0 0.0
    %332 = vmatpush1.msra.mxu0 0.0
    %333 = vmatprep.subr.mxu0 0.0
    %334 = vmatpush1.msra.mxu0 0.0
    %335 = vmatprep.subr.mxu0 0.0
    %336 = vmatpush1.msra.mxu0 0.0
    %337 = vmatprep.subr.mxu0 0.0
    %338 = vmatpush1.msra.mxu0 0.0
    %339 = vmatprep.subr.mxu0 0.0
    %340 = vmatpush1.msra.mxu0 0.0
    %341 = vmatprep.subr.mxu0 0.0
    %342 = vmatpush1.msra.mxu0 0.0
    %343 = vmatprep.subr.mxu0 0.0
    %344 = vmatpush1.msra.mxu0 0.0
    %345 = vmatprep.subr.mxu0 0.0
    %346 = vmatpush1.msra.mxu0 0.0
    %347 = vmatprep.subr.mxu0 0.0
    %348 = vmatpush1.msra.mxu0 0.0
    %349 = vmatprep.subr.mxu0 0.0
    %350 = vmatpush1.msra.mxu0 0.0
    %351 = vmatprep.subr.mxu0 0.0
    %352 = vmatpush1.msra.mxu0 0.0
    %353 = vmatprep.subr.mxu0 0.0
    %354 = vmatpush1.msra.mxu0 0.0
    %355 = vmatprep.subr.mxu0 0.0
    %356 = vmatpush1.msra.mxu0 0.0
    %357 = vmatprep.subr.mxu0 0.0
    %358 = vmatpush1.msra.mxu0 0.0
    %359 = vmatprep.subr.mxu0 0.0
    %360 = vmatpush1.msra.mxu0 0.0
    %361 = vmatprep.subr.mxu0 0.0
    %362 = vmatpush1.msra.mxu0 0.0
    %363 = vmatprep.mubr.f32.mxu0 0.0
    %364 = vmatmul.mubr.f32.gmra.mrb[0].mxu0 %v276
    %v365 = vpop.f32.mrb[0].mxu0
    %v366 = vadd.f32 0.0, %v365
    %v367 = vpop.f32.mrb[0].mxu0
    %368 = vmatprep.mubr.f32.mxu0 0.0
    %369 = vmatmul.mubr.f32.gmra.mrb[0].mxu0 %v279
    %v370 = vpop.f32.mrb[0].mxu0
    %v371 = vadd.f32 0.0, %v370
    %v372 = vpop.f32.mrb[0].mxu0
    %373 = vmatprep.mubr.f32.mxu0 0.0
    %374 = vmatmul.mubr.f32.gmra.mrb[0].mxu0 %v282
    %v375 = vpop.f32.mrb[0].mxu0
    %v376 = vadd.f32 0.0, %v375
    %v377 = vpop.f32.mrb[0].mxu0
    %378 = vmatprep.mubr.f32.mxu0 0.0
    %379 = vmatmul.mubr.f32.gmra.mrb[0].mxu0 %v285
    %v380 = vpop.f32.mrb[0].mxu0
    %v381 = vadd.f32 0.0, %v380
    %v382 = vpop.f32.mrb[0].mxu0
    %383 = vmatprep.mubr.f32.mxu0 0.0
    %384 = vmatmul.mubr.f32.gmra.mrb[0].mxu0 %v288
    %v385 = vpop.f32.mrb[0].mxu0
    %v386 = vadd.f32 0.0, %v385
    %v387 = vpop.f32.mrb[0].mxu0
    %388 = vmatprep.mubr.f32.mxu0 0.0
    %389 = vmatmul.mubr.f32.gmra.mrb[0].mxu0 %v291
    %v390 = vpop.f32.mrb[0].mxu0
    %v391 = vadd.f32 0.0, %v390
    %v392 = vpop.f32.mrb[0].mxu0
    %393 = vmatprep.mubr.f32.mxu0 0.0
    %394 = vmatmul.mubr.f32.gmra.mrb[0].mxu0 %v294
    %v395 = vpop.f32.mrb[0].mxu0
    %v396 = vadd.f32 0.0, %v395
    %v397 = vpop.f32.mrb[0].mxu0
    %398 = vmatprep.mubr.f32.mxu0 0.0
    %399 = vmatmul.mubr.f32.gmra.mrb[0].mxu0 %v297
    %v400 = vpop.f32.mrb[0].mxu0
    %v401 = vadd.f32 0.0, %v400
    %v402 = vpop.f32.mrb[0].mxu0
    %403 = vdwg.mxu0
    %v405 = vsel %vm274, %v250, 0
    %v408 = vsel %vm274, %v251, 0
    %v411 = vsel %vm274, %v252, 0
    %v414 = vsel %vm274, %v253, 0
    %v417 = vsel %vm274, %v254, 0
    %v420 = vsel %vm274, %v255, 0
    %v423 = vsel %vm274, %v256, 0
    %v426 = vsel %vm274, %v257, 0
    %428 = vmatprep.subr.mxu0 0.0
    %429 = vmatpush1.msra.mxu0 %v258
    %430 = vmatprep.subr.mxu0 0.0
    %431 = vmatpush1.msra.mxu0 %v259
    %432 = vmatprep.subr.mxu0 0.0
    %433 = vmatpush1.msra.mxu0 %v260
    %434 = vmatprep.subr.mxu0 0.0
    %435 = vmatpush1.msra.mxu0 %v261
    %436 = vmatprep.subr.mxu0 0.0
    %437 = vmatpush1.msra.mxu0 %v262
    %438 = vmatprep.subr.mxu0 0.0
    %439 = vmatpush1.msra.mxu0 %v263
    %440 = vmatprep.subr.mxu0 0.0
    %441 = vmatpush1.msra.mxu0 %v264
    %442 = vmatprep.subr.mxu0 0.0
    %443 = vmatpush1.msra.mxu0 %v265
    %444 = vmatprep.subr.mxu0 0.0
    %445 = vmatpush1.msra.mxu0 0.0
    %446 = vmatprep.subr.mxu0 0.0
    %447 = vmatpush1.msra.mxu0 0.0
    %448 = vmatprep.subr.mxu0 0.0
    %449 = vmatpush1.msra.mxu0 0.0
    %450 = vmatprep.subr.mxu0 0.0
    %451 = vmatpush1.msra.mxu0 0.0
    %452 = vmatprep.subr.mxu0 0.0
    %453 = vmatpush1.msra.mxu0 0.0
    %454 = vmatprep.subr.mxu0 0.0
    %455 = vmatpush1.msra.mxu0 0.0
    %456 = vmatprep.subr.mxu0 0.0
    %457 = vmatpush1.msra.mxu0 0.0
    %458 = vmatprep.subr.mxu0 0.0
    %459 = vmatpush1.msra.mxu0 0.0
    %460 = vmatprep.subr.mxu0 0.0
    %461 = vmatpush1.msra.mxu0 0.0
    %462 = vmatprep.subr.mxu0 0.0
    %463 = vmatpush1.msra.mxu0 0.0
    %464 = vmatprep.subr.mxu0 0.0
    %465 = vmatpush1.msra.mxu0 0.0
    %466 = vmatprep.subr.mxu0 0.0
    %467 = vmatpush1.msra.mxu0 0.0
    %468 = vmatprep.subr.mxu0 0.0
    %469 = vmatpush1.msra.mxu0 0.0
    %470 = vmatprep.subr.mxu0 0.0
    %471 = vmatpush1.msra.mxu0 0.0
    %472 = vmatprep.subr.mxu0 0.0
    %473 = vmatpush1.msra.mxu0 0.0
    %474 = vmatprep.subr.mxu0 0.0
    %475 = vmatpush1.msra.mxu0 0.0
    %476 = vmatprep.subr.mxu0 0.0
    %477 = vmatpush1.msra.mxu0 0.0
    %478 = vmatprep.subr.mxu0 0.0
    %479 = vmatpush1.msra.mxu0 0.0
    %480 = vmatprep.subr.mxu0 0.0
    %481 = vmatpush1.msra.mxu0 0.0
    %482 = vmatprep.subr.mxu0 0.0
    %483 = vmatpush1.msra.mxu0 0.0
    %484 = vmatprep.subr.mxu0 0.0
    %485 = vmatpush1.msra.mxu0 0.0
    %486 = vmatprep.subr.mxu0 0.0
    %487 = vmatpush1.msra.mxu0 0.0
    %488 = vmatprep.subr.mxu0 0.0
    %489 = vmatpush1.msra.mxu0 0.0
    %490 = vmatprep.subr.mxu0 0.0
    %491 = vmatpush1.msra.mxu0 0.0
    %492 = vmatprep.mubr.f32.mxu0 0.0
    %493 = vmatmul.mubr.f32.gmra.mrb[0].mxu0 %v405
    %v494 = vpop.f32.mrb[0].mxu0
    %v495 = vadd.f32 %v366, %v494
    %v496 = vpop.f32.mrb[0].mxu0
    %497 = vmatprep.mubr.f32.mxu0 0.0
    %498 = vmatmul.mubr.f32.gmra.mrb[0].mxu0 %v408
    %v499 = vpop.f32.mrb[0].mxu0
    %v500 = vadd.f32 %v371, %v499
    %v501 = vpop.f32.mrb[0].mxu0
    %502 = vmatprep.mubr.f32.mxu0 0.0
    %503 = vmatmul.mubr.f32.gmra.mrb[0].mxu0 %v411
    %v504 = vpop.f32.mrb[0].mxu0
    %v505 = vadd.f32 %v376, %v504
    %v506 = vpop.f32.mrb[0].mxu0
    %507 = vmatprep.mubr.f32.mxu0 0.0
    %508 = vmatmul.mubr.f32.gmra.mrb[0].mxu0 %v414
    %v509 = vpop.f32.mrb[0].mxu0
    %v510 = vadd.f32 %v381, %v509
    %v511 = vpop.f32.mrb[0].mxu0
    %512 = vmatprep.mubr.f32.mxu0 0.0
    %513 = vmatmul.mubr.f32.gmra.mrb[0].mxu0 %v417
    %v514 = vpop.f32.mrb[0].mxu0
    %v515 = vadd.f32 %v386, %v514
    %v516 = vpop.f32.mrb[0].mxu0
    %517 = vmatprep.mubr.f32.mxu0 0.0
    %518 = vmatmul.mubr.f32.gmra.mrb[0].mxu0 %v420
    %v519 = vpop.f32.mrb[0].mxu0
    %v520 = vadd.f32 %v391, %v519
    %v521 = vpop.f32.mrb[0].mxu0
    %522 = vmatprep.mubr.f32.mxu0 0.0
    %523 = vmatmul.mubr.f32.gmra.mrb[0].mxu0 %v423
    %v524 = vpop.f32.mrb[0].mxu0
    %v525 = vadd.f32 %v396, %v524
    %v526 = vpop.f32.mrb[0].mxu0
    %527 = vmatprep.mubr.f32.mxu0 0.0
    %528 = vmatmul.mubr.f32.gmra.mrb[0].mxu0 %v426
    %v529 = vpop.f32.mrb[0].mxu0
    %v530 = vadd.f32 %v401, %v529
    %v531 = vpop.f32.mrb[0].mxu0
    %532 = vdwg.mxu0
    %v533 = vld [vmem:[%s6] sm:$0x1]
    %v535 = vlaneseq
    %v536 = vshrl.u32 %v535, 7
    %v537 = vsub.s32 0, %v536
    %v538 = vrot.slane %v533, %v537
    %v540 = vadd.f32 %v495, %v538
    %v541 = vadd.f32 %v500, %v538
    %v542 = vadd.f32 %v505, %v538
    %v543 = vadd.f32 %v510, %v538
    %v544 = vadd.f32 %v515, %v538
    %v545 = vadd.f32 %v520, %v538
    %v546 = vadd.f32 %v525, %v538
    %v547 = vadd.f32 %v530, %v538
    %v548 = vsub.f32 0.0, %v540
    %v549 = vsub.f32 0.0, %v541
    %v550 = vsub.f32 0.0, %v542
    %v551 = vsub.f32 0.0, %v543
    %v552 = vsub.f32 0.0, %v544
    %v553 = vsub.f32 0.0, %v545
    %v554 = vsub.f32 0.0, %v546
    %v555 = vsub.f32 0.0, %v547
    %v556 = vmul.f32 %v548, 1.442695
    %v557 = vpow.pop %v556
    %v558 = vmul.f32 %v549, 1.442695
    %v559 = vpow.pop %v558
    %v560 = vmul.f32 %v550, 1.442695
    %v561 = vpow.pop %v560
    %v562 = vmul.f32 %v551, 1.442695
    %v563 = vpow.pop %v562
    %v564 = vmul.f32 %v552, 1.442695
    %v565 = vpow.pop %v564
    %v566 = vmul.f32 %v553, 1.442695
    %v567 = vpow.pop %v566
    %v568 = vmul.f32 %v554, 1.442695
    %v569 = vpow.pop %v568
    %v570 = vmul.f32 %v555, 1.442695
    %v571 = vpow.pop %v570
    %v572 = vadd.f32 %v557, 1.0
    %v573 = vadd.f32 %v559, 1.0
    %v574 = vadd.f32 %v561, 1.0
    %v575 = vadd.f32 %v563, 1.0
    %v576 = vadd.f32 %v565, 1.0
    %v577 = vadd.f32 %v567, 1.0
    %v578 = vadd.f32 %v569, 1.0
    %v579 = vadd.f32 %v571, 1.0
    %v580 = vrcp.pop %v572
    %v581 = vrcp.pop %v573
    %v582 = vrcp.pop %v574
    %v583 = vrcp.pop %v575
    %v584 = vrcp.pop %v576
    %v585 = vrcp.pop %v577
    %v586 = vrcp.pop %v578
    %v587 = vrcp.pop %v579
    %v588 = vmul.f32 %v540, %v580
    %v589 = vmul.f32 %v541, %v581
    %v590 = vmul.f32 %v542, %v582
    %v591 = vmul.f32 %v543, %v583
    %v592 = vmul.f32 %v544, %v584
    %v593 = vmul.f32 %v545, %v585
    %v594 = vmul.f32 %v546, %v586
    %v595 = vmul.f32 %v547, %v587
    %596 = vst [vmem:[#allocation7] sm:$0xff] %v588
    %597 = vst [vmem:[#allocation7 + $0x8] sm:$0xff] %v589
    %598 = vst [vmem:[#allocation7 + $0x10] sm:$0xff] %v590
    %599 = vst [vmem:[#allocation7 + $0x18] sm:$0xff] %v591
    %600 = vst [vmem:[#allocation7 + $0x20] sm:$0xff] %v592
    %601 = vst [vmem:[#allocation7 + $0x28] sm:$0xff] %v593
    %602 = vst [vmem:[#allocation7 + $0x30] sm:$0xff] %v594
    %603 = vst [vmem:[#allocation7 + $0x38] sm:$0xff] %v595
    // Predicated region
    $region38: #{tpu_custom_call.1} parent=1 // pred_check
      _
    $region39: #{tpu_custom_call.1} parent=1 // pred_check_branch
      %605 = sbr.rel (0) target = $region41
    $region40: #{tpu_custom_call.1} parent=1 // pred_region
      %s607 = ssub.s32 1024, 1024
      %608 = vsyncadd [#allocation4], %s607
      %s609 = sshll.u32 [#allocation7], 4
      %s610 = int_to_ptr.vmem [resolvable:$true] %s609
      %615 = dma.vmem_to_hbm [thread:$0]  %s610, 1024, %s7, [#allocation4], 128, 128, 8
    $region41: #{tpu_custom_call.1} parent=1 // pred_fallthru
      _
    // Predicated region
    $region42: #{tpu_custom_call.1} parent=1 // pred_check
      _
    $region43: #{tpu_custom_call.1} parent=1 // pred_check_branch
      %617 = sbr.rel (0) target = $region45
    $region44: #{tpu_custom_call.1} parent=1 // pred_region
      %618 = dma.done [#allocation4], 1024
    $region45: #{tpu_custom_call.1} parent=1 // pred_fallthru
      _
    %619 = vsyncpa [#allocation3], 1
    %620 = vsyncpa [#allocation6], 1
    %621 = vsyncpa [#allocation4], 1

</llo_original>
